<compile_context>
chip_gen: v5e
topology: v5e:2x2
jax: 0.10.0
libtpu: 0.0.40
codegen_flags: <defaults>
</compile_context>

<pallas_src>
import functools
import math

import jax
import jax.numpy as jnp
from jax import lax
from jax.experimental import pallas as pl
from jax.experimental.pallas import tpu as pltpu


def _round_up(x, m):
    return ((x + m - 1) // m) * m


def _compiler_params():
    return pltpu.CompilerParams(
        dimension_semantics=("parallel",),
        vmem_limit_bytes=32 * 1024 * 1024,
    )


# ---------------------------------------------------------------------------
# Kernels
# ---------------------------------------------------------------------------

def _degree_kernel(adj_ref, dinv_ref):
    # dinv = (deg(A) + 1)^{-1/2}; the +1 folds in the self loop of (A + I).
    deg = jnp.sum(adj_ref[...].astype(jnp.float32), axis=1, keepdims=True) + 1.0
    dinv_ref[...] = lax.rsqrt(deg)


def _support_kernel(x_ref, w_ref, dinv_ref, ss_ref):
    # Ss = dinv * (X @ W)   (row-scaled support, stored bf16 for the MXU)
    s = jnp.dot(x_ref[...], w_ref[...], preferred_element_type=jnp.float32)
    ss_ref[...] = (dinv_ref[...] * s).astype(ss_ref.dtype)


def _aggregate_kernel(adj_ref, ss_full_ref, ss_tile_ref, dinv_ref, b_ref,
                      out_ref, *, apply_relu):
    # A_hat @ S = dinv * (A @ Ss + Ss), with Ss = dinv * S.
    agg = jnp.dot(adj_ref[...], ss_full_ref[...],
                  preferred_element_type=jnp.float32)
    out = dinv_ref[...] * (agg + ss_tile_ref[...].astype(jnp.float32)) + b_ref[...]
    if apply_relu:
        out = jnp.maximum(out, 0.0)
    out_ref[...] = out.astype(out_ref.dtype)


# ---------------------------------------------------------------------------
# pallas_call wrappers (row-tiled over the node axis)
# ---------------------------------------------------------------------------

def _degrees(adj_p, tm):
    n_p = adj_p.shape[0]
    return pl.pallas_call(
        _degree_kernel,
        out_shape=jax.ShapeDtypeStruct((n_p, 1), jnp.float32),
        grid=(n_p // tm,),
        in_specs=[pl.BlockSpec((tm, n_p), lambda i: (i, 0))],
        out_specs=pl.BlockSpec((tm, 1), lambda i: (i, 0)),
        compiler_params=_compiler_params(),
    )(adj_p)


def _support(x_p, w_p, dinv, tm):
    n_p, f_p = x_p.shape
    h_p = w_p.shape[1]
    return pl.pallas_call(
        _support_kernel,
        out_shape=jax.ShapeDtypeStruct((n_p, h_p), jnp.bfloat16),
        grid=(n_p // tm,),
        in_specs=[pl.BlockSpec((tm, f_p), lambda i: (i, 0)),   # x row block
                  pl.BlockSpec((f_p, h_p), lambda i: (0, 0)),  # weight (resident)
                  pl.BlockSpec((tm, 1), lambda i: (i, 0))],    # dinv row block
        out_specs=pl.BlockSpec((tm, h_p), lambda i: (i, 0)),
        compiler_params=_compiler_params(),
    )(x_p, w_p, dinv)


def _aggregate(adj_p, ss, dinv, b_p, tm, *, apply_relu, out_dtype):
    n_p = adj_p.shape[0]
    h_p = ss.shape[1]
    kernel = functools.partial(_aggregate_kernel, apply_relu=apply_relu)
    return pl.pallas_call(
        kernel,
        out_shape=jax.ShapeDtypeStruct((n_p, h_p), out_dtype),
        grid=(n_p // tm,),
        in_specs=[pl.BlockSpec((tm, n_p), lambda i: (i, 0)),   # adj row block (streamed)
                  pl.BlockSpec((n_p, h_p), lambda i: (0, 0)),  # Ss, all rows (resident)
                  pl.BlockSpec((tm, h_p), lambda i: (i, 0)),   # Ss, this row block
                  pl.BlockSpec((tm, 1), lambda i: (i, 0)),     # dinv row block
                  pl.BlockSpec((1, h_p), lambda i: (0, 0))],   # bias
        out_specs=pl.BlockSpec((tm, h_p), lambda i: (i, 0)),
        compiler_params=_compiler_params(),
    )(adj_p, ss, ss, dinv, b_p)


def gcn_tv_forward(x, adj, w1, b1, w2, b2, *, row_tile=256):
    """Eval-mode forward of GCN_TV.  x: [N, nfeat] f32, adj: [N, N] f32."""
    n, f_in = x.shape
    h_dim = w1.shape[1]
    o_dim = w2.shape[1]

    # Tile / padding geometry: lanes padded to 128, node axis to the row tile.
    tm = min(row_tile, _round_up(n, 16))
    tm = max(16, _round_up(tm, 16))
    n_p = _round_up(n, tm)
    f_p = _round_up(f_in, 128)
    h_p = _round_up(h_dim, 128)
    o_p = _round_up(o_dim, 128)

    f32, bf16 = jnp.float32, jnp.bfloat16
    x_p = jnp.zeros((n_p, f_p), f32).at[:n, :f_in].set(x).astype(bf16)
    adj_p = jnp.zeros((n_p, n_p), f32).at[:n, :n].set(adj).astype(bf16)
    w1_p = jnp.zeros((f_p, h_p), f32).at[:f_in, :h_dim].set(w1).astype(bf16)
    w2_p = jnp.zeros((h_p, o_p), f32).at[:h_dim, :o_dim].set(w2).astype(bf16)
    b1_p = jnp.zeros((1, h_p), f32).at[0, :h_dim].set(b1)
    b2_p = jnp.zeros((1, o_p), f32).at[0, :o_dim].set(b2)

    dinv = _degrees(adj_p, tm)                                # [n_p, 1] f32
    ss1 = _support(x_p, w1_p, dinv, tm)                       # dinv * (x @ W1), bf16
    h = _aggregate(adj_p, ss1, dinv, b1_p, tm,
                   apply_relu=True, out_dtype=bf16)           # relu(A_hat@(x@W1)+b1)
    # TODO(synk): training-mode dropout (p=0.6) not implemented; eval semantics used.
    ss2 = _support(h, w2_p, dinv, tm)                         # dinv * (h @ W2), bf16
    out = _aggregate(adj_p, ss2, dinv, b2_p, tm,
                     apply_relu=False, out_dtype=f32)         # A_hat@(h@W2)+b2
    return out[:n, :o_dim]


# ---------------------------------------------------------------------------
# Reference, init, and smoke test
# ---------------------------------------------------------------------------

def init_graph_conv_params(key, in_features, out_features):
    # Matches GraphConvolution.reset_parameters: U(-stdv, stdv), stdv = 1/sqrt(out).
    stdv = 1.0 / math.sqrt(out_features)
    k_w, k_b = jax.random.split(key)
    w = jax.random.uniform(k_w, (in_features, out_features), jnp.float32,
                           minval=-stdv, maxval=stdv)
    b = jax.random.uniform(k_b, (out_features,), jnp.float32,
                           minval=-stdv, maxval=stdv)
    return w, b


def reference_forward(x, adj, w1, b1, w2, b2):
    # Pure-JAX f32 reference mirroring the PyTorch module (eval mode).
    n = adj.shape[0]
    a = adj + jnp.eye(n, dtype=adj.dtype)
    deg = a.sum(axis=1)
    dinv = deg ** -0.5
    a_norm = jnp.diag(dinv) @ (a @ jnp.diag(dinv))
    h = jnp.maximum(a_norm @ (x @ w1) + b1, 0.0)
    return a_norm @ (h @ w2) + b2


if __name__ == "__main__":
    key = jax.random.PRNGKey(0)
    k_x, k_adj, k_gc1, k_gc2 = jax.random.split(key, 4)

    n_nodes, n_feat, n_hid, n_out = 16, 8, 32, 8

    x = jax.random.normal(k_x, (n_nodes, n_feat), jnp.float32)
    # Random symmetric 0/1 adjacency (no self loops; normalization adds them).
    a_raw = (jax.random.uniform(k_adj, (n_nodes, n_nodes)) < 0.3).astype(jnp.float32)
    adj = jnp.maximum(a_raw, a_raw.T) * (1.0 - jnp.eye(n_nodes, dtype=jnp.float32))

    w1, b1 = init_graph_conv_params(k_gc1, n_feat, n_hid)
    w2, b2 = init_graph_conv_params(k_gc2, n_hid, n_out)

    out = gcn_tv_forward(x, adj, w1, b1, w2, b2)
    out = jax.block_until_ready(out)

    ref = reference_forward(x, adj, w1, b1, w2, b2)
    assert out.shape == (n_nodes, n_out)
    # bf16 MXU operands (f32 accumulation) => compare at bf16-level tolerance.
    assert jnp.allclose(out, ref, atol=2e-2, rtol=2e-2), (
        "mismatch vs reference: max abs err = "
        f"{float(jnp.max(jnp.abs(out - ref))):.4e}")

    print("KERNEL_OK")
</pallas_src>

<mosaic_0001>
module attributes {stable_mosaic.version = 11 : i64} {
  func.func @_degree_kernel(%arg0: i32, %arg1: memref<16x16xbf16, #tpu.memory_space<vmem>>, %arg2: memref<16x1xf32, #tpu.memory_space<vmem>>) attributes {dimension_semantics = [#tpu.dimension_semantics<parallel>], iteration_bounds = array<i64: 1>, scalar_prefetch = 0 : i64, scratch_operands = 0 : i64, tpu.core_type = #tpu.core_type<tc>, window_params = [{transform_indices = @transform_0, window_bounds = array<i64: 16, 16>}, {transform_indices = @transform_1, window_bounds = array<i64: 16, 1>}]} {
    %c0 = arith.constant 0 : index
    %c0_0 = arith.constant 0 : index
    %0 = vector.load %arg1[%c0, %c0_0] : memref<16x16xbf16, #tpu.memory_space<vmem>>, vector<16x16xbf16>
    %1 = arith.extf %0 : vector<16x16xbf16> to vector<16x16xf32>
    %cst = arith.constant dense<0.000000e+00> : vector<16xf32>
    %2 = vector.multi_reduction <add>, %1, %cst [1] : vector<16x16xf32> to vector<16xf32>
    %3 = vector.shape_cast %2 : vector<16xf32> to vector<16x1xf32>
    %cst_1 = arith.constant 1.000000e+00 : f32
    %4 = vector.broadcast %cst_1 : f32 to vector<16x1xf32>
    %5 = arith.addf %3, %4 : vector<16x1xf32>
    %6 = math.rsqrt %5 : vector<16x1xf32>
    %c0_2 = arith.constant 0 : index
    %c0_3 = arith.constant 0 : index
    %7 = vector.load %arg2[%c0_2, %c0_3] : memref<16x1xf32, #tpu.memory_space<vmem>>, vector<16x1xf32>
    tpu.vector_store %arg2[%c0_2, %c0_3], %6 {strides = array<i32>} : memref<16x1xf32, #tpu.memory_space<vmem>>, vector<16x1xf32>,
    return
  }
  func.func @transform_0(%arg0: i32) -> (i32, i32) {
    %c0_i32 = arith.constant 0 : i32
    %c0_i32_0 = arith.constant 0 : i32
    return %arg0, %c0_i32 : i32, i32
  }
  func.func @transform_1(%arg0: i32) -> (i32, i32) {
    %c0_i32 = arith.constant 0 : i32
    %c0_i32_0 = arith.constant 0 : i32
    return %arg0, %c0_i32 : i32, i32
  }
}

</mosaic_0001>

<llo_original>
// kernel: tpu_custom_call.1
$region0: #{tpu_custom_call.1}
  #allocation0 [shape = 'u32[]', space=smem, size = 0x4, offset = 0x4, fixed_abs, tag = 'smem constant byte address 0x4 - core index']
  #allocation1 [shape = 'u32[72,128]{1,0:T(1,128)}', space=vmem, size = 0x9000, scoped, tag = 'internal scratch']
  %s0 = inlined_call_operand.hbm [shape: bf16[16,16], index: 0, kind: input, shape index: {}]
  %s1 = inlined_call_operand.vmem [shape: f32[16,1], index: 1, kind: output, shape index: {}]
  %s2 = sld [smem:[#allocation0]]
  $region18: #{tpu_custom_call.1} parent=0
    _
  %s4 = ssub.s32 1, %s2
  %s5 = scalar_select 0, %s4, %s2
  $region1: #{tpu_custom_call.1} parent=0
    #allocation2 [shape = 'u8[4096]{0}', space=vmem, size = 0x1000, scoped, tag = 'input window, operand 0, single buffered']
    #allocation3 [shape = 's32[1]{0}', space=sflag, size = 0x4, scoped, tag = 'scoped memory for tpu_custom_call.1']
    %6 = vsyncpa [#allocation3], 0
    // Predicated region
    $region2: #{tpu_custom_call.1} parent=1 // pred_check
      _
    $region3: #{tpu_custom_call.1} parent=1 // pred_check_branch
      %8 = sbr.rel (0) target = $region5
    $region4: #{tpu_custom_call.1} parent=1 // pred_region
      %10 = vsyncadd [#allocation3], 0
      %s11 = sshll.u32 %s0, 4
      %s12 = int_to_ptr.hbm [resolvable:$true] %s11
      %s13 = sshll.u32 [#allocation2], 4
      %s14 = int_to_ptr.vmem [resolvable:$true] %s13
      %19 = dma.hbm_to_vmem [thread:$0]  %s12, 128, %s14, [#allocation3], 64, 64, 4
    $region5: #{tpu_custom_call.1} parent=1 // pred_fallthru
      _
    // Predicated region
    $region6: #{tpu_custom_call.1} parent=1 // pred_check
      _
    $region7: #{tpu_custom_call.1} parent=1 // pred_check_branch
      %21 = sbr.rel (0) target = $region9
    $region8: #{tpu_custom_call.1} parent=1 // pred_region
      %23 = dma.done [#allocation3], 128
    $region9: #{tpu_custom_call.1} parent=1 // pred_fallthru
      _
    %v24 = vld [vmem:[#allocation2] sm:$0xf]
    %v25 = vld [vmem:[#allocation2 + $0x4] sm:$0xf]
    %v26 = vunpack.c.l.bf16 %v24
    %v27 = vunpack.c.l.bf16 %v25
    %vm28 = vcmask 130048
    %v29 = vsel %vm28, %v26, 0.0
    %30 = vadd.xlane.f32.xlu0 %v29
    %v31 = vpop.xlane.xlu0 %30
    %v32 = vsel %vm28, %v27, 0.0
    %33 = vadd.xlane.f32.xlu0 %v32
    %v34 = vpop.xlane.xlu0 %33
    %v35 = vadd.f32 %v31, 1.0
    %v36 = vadd.f32 %v34, 1.0
    %v37 = vrsqrt.pop %v35
    %v38 = vmul.f32 %v37, %v35
    %v39 = vmul.f32 %v38, %v37
    %v40 = vmul.f32 0.5, %v39
    %v41 = vsub.f32 1.5, %v40
    %v42 = vmul.f32 %v37, %v41
    %vm43 = vweird.f32 %v35
    %vm44 = vweird.f32 %v37
    %vm45 = vmor %vm43, %vm44
    %v46 = vsel %vm45, %v37, %v42
    %v47 = vrsqrt.pop %v36
    %v48 = vmul.f32 %v47, %v36
    %v49 = vmul.f32 %v48, %v47
    %v50 = vmul.f32 0.5, %v49
    %v51 = vsub.f32 1.5, %v50
    %v52 = vmul.f32 %v47, %v51
    %vm53 = vweird.f32 %v36
    %vm54 = vweird.f32 %v47
    %vm55 = vmor %vm53, %vm54
    %v56 = vsel %vm55, %v47, %v52
    %vm57 = vcmask 7168
    %58 = vst.msk [vmem:[%s1] sm:$0xff] %vm57, %v46
    %59 = vst.msk [vmem:[%s1 + $0x8] sm:$0xff] %vm57, %v56
    // Predicated region
    $region10: #{tpu_custom_call.1} parent=1 // pred_check
      _
    $region11: #{tpu_custom_call.1} parent=1 // pred_check_branch
      %61 = sbr.rel (0) target = $region13
    $region12: #{tpu_custom_call.1} parent=1 // pred_region
      _
    $region13: #{tpu_custom_call.1} parent=1 // pred_fallthru
      _
    // Predicated region
    $region14: #{tpu_custom_call.1} parent=1 // pred_check
      _
    $region15: #{tpu_custom_call.1} parent=1 // pred_check_branch
      %63 = sbr.rel (0) target = $region17
    $region16: #{tpu_custom_call.1} parent=1 // pred_region
      _
    $region17: #{tpu_custom_call.1} parent=1 // pred_fallthru
      _
    %64 = vsyncpa [#allocation3], 1

</llo_original>
